<compile_context>
chip_gen: v5e
topology: v5e:2x2
jax: 0.10.0
libtpu: 0.0.40
codegen_flags: <defaults>
</compile_context>

<pallas_src>
import jax
import jax.numpy as jnp
from jax import lax
from jax.experimental import pallas as pl
from jax.experimental.pallas import tpu as pltpu

# ---- hyperparameters (small, consistent with the module's globals) ----
VOCAB_SIZE = 64
BLOCK_SIZE = 8          # max sequence length
N_EMBED    = 32
HEAD_SIZE  = N_EMBED    # required for lm_head(n_embed, vocab) to consume att out
BATCH      = 2
SEQ        = BLOCK_SIZE # T
V_PAD      = 128        # lane-dense vocab padding for the lm_head / output store


def _gpt_kernel(idx_ref, pos_ref, tok_tab_ref, wqkv_ref, wlm_ref, blm_ref,
                out_ref, x_scr):
    # idx_ref    : SMEM (B*T,) int32   (scalar prefetch)
    # pos_ref    : VMEM (T, E)
    # tok_tab_ref: VMEM (VOCAB, E)
    # wqkv_ref   : VMEM (E, 3H)        (wq | wk | wv fused)
    # wlm_ref    : VMEM (H, V_PAD)     (zero-padded beyond V)
    # blm_ref    : VMEM (1, V_PAD)
    # out_ref    : VMEM (B*T, V_PAD)
    # x_scr      : VMEM (B*T, E) scratch
    T = pos_ref.shape[0]
    E = pos_ref.shape[1]
    H = wlm_ref.shape[0]
    BT = out_ref.shape[0]
    B = BT // T

    # ---- in-kernel token-embedding gather (data-dependent rows) ----
    for i in range(BT):  # static unroll; 16 tiny row copies from the VMEM table
        x_scr[pl.ds(i, 1), :] = tok_tab_ref[pl.ds(idx_ref[i], 1), :]

    pos = pos_ref[...]                                   # (T, E)
    pos_full = jnp.concatenate([pos] * B, axis=0)        # (B*T, E)
    x = x_scr[...] + pos_full                            # (B*T, E)

    # ---- fused QKV projection: one (BT, E) x (E, 3H) MXU push ----
    qkv = jnp.dot(x, wqkv_ref[...], preferred_element_type=jnp.float32)  # (BT, 3H)
    q = qkv[:, 0:H]
    k = qkv[:, H:2 * H]
    v = qkv[:, 2 * H:3 * H]

    # causal mask (shared across batch): keep col <= row
    row = lax.broadcasted_iota(jnp.int32, (T, T), 0)
    col = lax.broadcasted_iota(jnp.int32, (T, T), 1)
    causal = col <= row

    scale = E ** -0.5   # module scales by the *input* embed size

    att_parts = []
    for b in range(B):  # B=2, static; attention itself is per-batch (T, T)
        qb = q[b * T:(b + 1) * T]
        kb = k[b * T:(b + 1) * T]
        vb = v[b * T:(b + 1) * T]

        # wei = q @ k^T * scale, contracting last dims (no explicit transpose)
        wei = lax.dot_general(qb, kb, (((1,), (1,)), ((), ())),
                              preferred_element_type=jnp.float32) * scale
        wei = jnp.where(causal, wei, -jnp.inf)

        # Reference module: F.softmax(..., dim=1) on (B, T, T) == softmax over
        # the *query* axis -> axis 0 of the per-batch (T, T) tile.
        m = jnp.max(wei, axis=0, keepdims=True)
        e = jnp.exp(wei - m)
        sm = e / jnp.sum(e, axis=0, keepdims=True)        # (T, T)

        att_parts.append(jnp.dot(sm, vb, preferred_element_type=jnp.float32))

    att = jnp.concatenate(att_parts, axis=0)              # (B*T, H)

    # lm_head on the lane-padded vocab: (BT, H) x (H, 128) -> lane-dense store
    logits = jnp.dot(att, wlm_ref[...],
                     preferred_element_type=jnp.float32) + blm_ref[...]
    out_ref[...] = logits


def gpt_forward(idx, params):
    """idx: (B, T) int32.  Returns (logits (B, T, vocab_size), loss=None)."""
    B, T = idx.shape
    E, H, V, VP = N_EMBED, HEAD_SIZE, VOCAB_SIZE, V_PAD
    BT = B * T

    idx_flat = idx.reshape(BT).astype(jnp.int32)
    pos = params["pos_table"][:T]                                       # (T, E)
    wqkv = jnp.concatenate(
        [params["wq"], params["wk"], params["wv"]], axis=1)             # (E, 3H)
    w_lm_pad = jnp.zeros((H, VP), jnp.float32).at[:, :V].set(params["w_lm"])
    b_lm_pad = jnp.zeros((1, VP), jnp.float32).at[:, :V].set(params["b_lm"])

    out = pl.pallas_call(
        _gpt_kernel,
        out_shape=jax.ShapeDtypeStruct((BT, VP), jnp.float32),
        grid_spec=pltpu.PrefetchScalarGridSpec(
            num_scalar_prefetch=1,          # idx_flat -> SMEM
            grid=(1,),                      # single invocation (no per-step overhead)
            in_specs=[
                pl.BlockSpec((T, E), lambda i, idx: (0, 0)),            # pos
                pl.BlockSpec((VOCAB_SIZE, E), lambda i, idx: (0, 0)),   # tok_table
                pl.BlockSpec((E, 3 * H), lambda i, idx: (0, 0)),        # wqkv fused
                pl.BlockSpec((H, VP), lambda i, idx: (0, 0)),           # w_lm (padded)
                pl.BlockSpec((1, VP), lambda i, idx: (0, 0)),           # b_lm (padded)
            ],
            out_specs=pl.BlockSpec((BT, VP), lambda i, idx: (0, 0)),
            scratch_shapes=[pltpu.VMEM((BT, E), jnp.float32)],
        ),
        compiler_params=pltpu.CompilerParams(
            dimension_semantics=("arbitrary",)),
    )(idx_flat, pos, params["tok_table"], wqkv, w_lm_pad, b_lm_pad)

    logits = out.reshape(B, T, VP)[:, :, :V]
    # TODO(synk): target-path cross_entropy loss and generate_captions (multinomial
    # sampling) are host-side / not part of the target=None forward; not kernelized.
    return logits, None


def init_params(key):
    """Deterministic init matching the module: N(0, 0.02) weights, zero bias."""
    ks = jax.random.split(key, 6)
    std = 0.02
    return {
        "tok_table": std * jax.random.normal(ks[0], (VOCAB_SIZE, N_EMBED), jnp.float32),
        "pos_table": std * jax.random.normal(ks[1], (BLOCK_SIZE, N_EMBED), jnp.float32),
        # stored already transposed for right-multiply: (in, out)
        "wk": std * jax.random.normal(ks[2], (N_EMBED, HEAD_SIZE), jnp.float32),
        "wq": std * jax.random.normal(ks[3], (N_EMBED, HEAD_SIZE), jnp.float32),
        "wv": std * jax.random.normal(ks[4], (N_EMBED, HEAD_SIZE), jnp.float32),
        "w_lm": std * jax.random.normal(ks[5], (HEAD_SIZE, VOCAB_SIZE), jnp.float32),
        "b_lm": jnp.zeros((1, VOCAB_SIZE), jnp.float32),
    }


def _reference_forward(idx, params):
    """Pure-JAX reference mirroring the PyTorch forward exactly."""
    B, T = idx.shape
    x = params["tok_table"][idx] + params["pos_table"][:T]
    k = x @ params["wk"]
    q = x @ params["wq"]
    v = x @ params["wv"]
    wei = jnp.einsum("btd,bsd->bts", q, k) * (N_EMBED ** -0.5)
    tril = jnp.tril(jnp.ones((T, T), jnp.float32))
    wei = jnp.where(tril == 0, -jnp.inf, wei)
    sm = jax.nn.softmax(wei, axis=1)          # dim=1 quirk reproduced
    att = jnp.einsum("bts,bsh->bth", sm, v)
    return att @ params["w_lm"] + params["b_lm"][0]


if __name__ == "__main__":
    key = jax.random.PRNGKey(0)
    pkey, ikey = jax.random.split(key)
    params = init_params(pkey)
    idx = jax.random.randint(ikey, (BATCH, SEQ), 0, VOCAB_SIZE, dtype=jnp.int32)

    logits, loss = gpt_forward(idx, params)
    logits = jax.block_until_ready(logits)

    ref = _reference_forward(idx, params)
    assert logits.shape == (BATCH, SEQ, VOCAB_SIZE)
    assert loss is None
    assert jnp.allclose(logits, ref, atol=1e-5, rtol=1e-5)
    print("KERNEL_OK")
</pallas_src>

<mosaic_0001>
module attributes {stable_mosaic.version = 11 : i64} {
  func.func @_gpt_kernel(%arg0: i32, %arg1: memref<16xi32, #tpu.memory_space<smem>>, %arg2: memref<8x32xf32, #tpu.memory_space<vmem>>, %arg3: memref<64x32xf32, #tpu.memory_space<vmem>>, %arg4: memref<32x96xf32, #tpu.memory_space<vmem>>, %arg5: memref<32x128xf32, #tpu.memory_space<vmem>>, %arg6: memref<1x128xf32, #tpu.memory_space<vmem>>, %arg7: memref<16x128xf32, #tpu.memory_space<vmem>>, %arg8: memref<16x32xf32, #tpu.memory_space<vmem>>) attributes {dimension_semantics = [#tpu.dimension_semantics<arbitrary>], iteration_bounds = array<i64: 1>, scalar_prefetch = 1 : i64, scratch_operands = 1 : i64, tpu.core_type = #tpu.core_type<tc>, window_params = [{pipeline_mode = #tpu.pipeline_mode<synchronous>, transform_indices = @transform_0, window_bounds = array<i64: 8, 32>}, {pipeline_mode = #tpu.pipeline_mode<synchronous>, transform_indices = @transform_1, window_bounds = array<i64: 64, 32>}, {pipeline_mode = #tpu.pipeline_mode<synchronous>, transform_indices = @transform_2, window_bounds = array<i64: 32, 96>}, {pipeline_mode = #tpu.pipeline_mode<synchronous>, transform_indices = @transform_3, window_bounds = array<i64: 32, 128>}, {pipeline_mode = #tpu.pipeline_mode<synchronous>, transform_indices = @transform_4, window_bounds = array<i64: 1, 128>}, {pipeline_mode = #tpu.pipeline_mode<synchronous>, transform_indices = @transform_5, window_bounds = array<i64: 16, 128>}]} {
    %c0 = arith.constant 0 : index
    %0 = memref.load %arg1[%c0] : memref<16xi32, #tpu.memory_space<smem>>
    %1 = arith.index_cast %0 : i32 to index
    %c0_0 = arith.constant 0 : index
    %2 = vector.load %arg3[%1, %c0_0] : memref<64x32xf32, #tpu.memory_space<vmem>>, vector<1x32xf32>
    %c0_1 = arith.constant 0 : index
    %c0_2 = arith.constant 0 : index
    %3 = vector.load %arg8[%c0_1, %c0_2] : memref<16x32xf32, #tpu.memory_space<vmem>>, vector<1x32xf32>
    tpu.vector_store %arg8[%c0_1, %c0_2], %2 {strides = array<i32>} : memref<16x32xf32, #tpu.memory_space<vmem>>, vector<1x32xf32>,
    %c1 = arith.constant 1 : index
    %4 = memref.load %arg1[%c1] : memref<16xi32, #tpu.memory_space<smem>>
    %5 = arith.index_cast %4 : i32 to index
    %c0_3 = arith.constant 0 : index
    %6 = vector.load %arg3[%5, %c0_3] : memref<64x32xf32, #tpu.memory_space<vmem>>, vector<1x32xf32>
    %c1_4 = arith.constant 1 : index
    %c0_5 = arith.constant 0 : index
    %7 = vector.load %arg8[%c1_4, %c0_5] : memref<16x32xf32, #tpu.memory_space<vmem>>, vector<1x32xf32>
    tpu.vector_store %arg8[%c1_4, %c0_5], %6 {strides = array<i32>} : memref<16x32xf32, #tpu.memory_space<vmem>>, vector<1x32xf32>,
    %c2 = arith.constant 2 : index
    %8 = memref.load %arg1[%c2] : memref<16xi32, #tpu.memory_space<smem>>
    %9 = arith.index_cast %8 : i32 to index
    %c0_6 = arith.constant 0 : index
    %10 = vector.load %arg3[%9, %c0_6] : memref<64x32xf32, #tpu.memory_space<vmem>>, vector<1x32xf32>
    %c2_7 = arith.constant 2 : index
    %c0_8 = arith.constant 0 : index
    %11 = vector.load %arg8[%c2_7, %c0_8] : memref<16x32xf32, #tpu.memory_space<vmem>>, vector<1x32xf32>
    tpu.vector_store %arg8[%c2_7, %c0_8], %10 {strides = array<i32>} : memref<16x32xf32, #tpu.memory_space<vmem>>, vector<1x32xf32>,
    %c3 = arith.constant 3 : index
    %12 = memref.load %arg1[%c3] : memref<16xi32, #tpu.memory_space<smem>>
    %13 = arith.index_cast %12 : i32 to index
    %c0_9 = arith.constant 0 : index
    %14 = vector.load %arg3[%13, %c0_9] : memref<64x32xf32, #tpu.memory_space<vmem>>, vector<1x32xf32>
    %c3_10 = arith.constant 3 : index
    %c0_11 = arith.constant 0 : index
    %15 = vector.load %arg8[%c3_10, %c0_11] : memref<16x32xf32, #tpu.memory_space<vmem>>, vector<1x32xf32>
    tpu.vector_store %arg8[%c3_10, %c0_11], %14 {strides = array<i32>} : memref<16x32xf32, #tpu.memory_space<vmem>>, vector<1x32xf32>,
    %c4 = arith.constant 4 : index
    %16 = memref.load %arg1[%c4] : memref<16xi32, #tpu.memory_space<smem>>
    %17 = arith.index_cast %16 : i32 to index
    %c0_12 = arith.constant 0 : index
    %18 = vector.load %arg3[%17, %c0_12] : memref<64x32xf32, #tpu.memory_space<vmem>>, vector<1x32xf32>
    %c4_13 = arith.constant 4 : index
    %c0_14 = arith.constant 0 : index
    %19 = vector.load %arg8[%c4_13, %c0_14] : memref<16x32xf32, #tpu.memory_space<vmem>>, vector<1x32xf32>
    tpu.vector_store %arg8[%c4_13, %c0_14], %18 {strides = array<i32>} : memref<16x32xf32, #tpu.memory_space<vmem>>, vector<1x32xf32>,
    %c5 = arith.constant 5 : index
    %20 = memref.load %arg1[%c5] : memref<16xi32, #tpu.memory_space<smem>>
    %21 = arith.index_cast %20 : i32 to index
    %c0_15 = arith.constant 0 : index
    %22 = vector.load %arg3[%21, %c0_15] : memref<64x32xf32, #tpu.memory_space<vmem>>, vector<1x32xf32>
    %c5_16 = arith.constant 5 : index
    %c0_17 = arith.constant 0 : index
    %23 = vector.load %arg8[%c5_16, %c0_17] : memref<16x32xf32, #tpu.memory_space<vmem>>, vector<1x32xf32>
    tpu.vector_store %arg8[%c5_16, %c0_17], %22 {strides = array<i32>} : memref<16x32xf32, #tpu.memory_space<vmem>>, vector<1x32xf32>,
    %c6 = arith.constant 6 : index
    %24 = memref.load %arg1[%c6] : memref<16xi32, #tpu.memory_space<smem>>
    %25 = arith.index_cast %24 : i32 to index
    %c0_18 = arith.constant 0 : index
    %26 = vector.load %arg3[%25, %c0_18] : memref<64x32xf32, #tpu.memory_space<vmem>>, vector<1x32xf32>
    %c6_19 = arith.constant 6 : index
    %c0_20 = arith.constant 0 : index
    %27 = vector.load %arg8[%c6_19, %c0_20] : memref<16x32xf32, #tpu.memory_space<vmem>>, vector<1x32xf32>
    tpu.vector_store %arg8[%c6_19, %c0_20], %26 {strides = array<i32>} : memref<16x32xf32, #tpu.memory_space<vmem>>, vector<1x32xf32>,
    %c7 = arith.constant 7 : index
    %28 = memref.load %arg1[%c7] : memref<16xi32, #tpu.memory_space<smem>>
    %29 = arith.index_cast %28 : i32 to index
    %c0_21 = arith.constant 0 : index
    %30 = vector.load %arg3[%29, %c0_21] : memref<64x32xf32, #tpu.memory_space<vmem>>, vector<1x32xf32>
    %c7_22 = arith.constant 7 : index
    %c0_23 = arith.constant 0 : index
    %31 = vector.load %arg8[%c7_22, %c0_23] : memref<16x32xf32, #tpu.memory_space<vmem>>, vector<1x32xf32>
    tpu.vector_store %arg8[%c7_22, %c0_23], %30 {strides = array<i32>} : memref<16x32xf32, #tpu.memory_space<vmem>>, vector<1x32xf32>,
    %c8 = arith.constant 8 : index
    %32 = memref.load %arg1[%c8] : memref<16xi32, #tpu.memory_space<smem>>
    %33 = arith.index_cast %32 : i32 to index
    %c0_24 = arith.constant 0 : index
    %34 = vector.load %arg3[%33, %c0_24] : memref<64x32xf32, #tpu.memory_space<vmem>>, vector<1x32xf32>
    %c8_25 = arith.constant 8 : index
    %c0_26 = arith.constant 0 : index
    %35 = vector.load %arg8[%c8_25, %c0_26] : memref<16x32xf32, #tpu.memory_space<vmem>>, vector<1x32xf32>
    tpu.vector_store %arg8[%c8_25, %c0_26], %34 {strides = array<i32>} : memref<16x32xf32, #tpu.memory_space<vmem>>, vector<1x32xf32>,
    %c9 = arith.constant 9 : index
    %36 = memref.load %arg1[%c9] : memref<16xi32, #tpu.memory_space<smem>>
    %37 = arith.index_cast %36 : i32 to index
    %c0_27 = arith.constant 0 : index
    %38 = vector.load %arg3[%37, %c0_27] : memref<64x32xf32, #tpu.memory_space<vmem>>, vector<1x32xf32>
    %c9_28 = arith.constant 9 : index
    %c0_29 = arith.constant 0 : index
    %39 = vector.load %arg8[%c9_28, %c0_29] : memref<16x32xf32, #tpu.memory_space<vmem>>, vector<1x32xf32>
    tpu.vector_store %arg8[%c9_28, %c0_29], %38 {strides = array<i32>} : memref<16x32xf32, #tpu.memory_space<vmem>>, vector<1x32xf32>,
    %c10 = arith.constant 10 : index
    %40 = memref.load %arg1[%c10] : memref<16xi32, #tpu.memory_space<smem>>
    %41 = arith.index_cast %40 : i32 to index
    %c0_30 = arith.constant 0 : index
    %42 = vector.load %arg3[%41, %c0_30] : memref<64x32xf32, #tpu.memory_space<vmem>>, vector<1x32xf32>
    %c10_31 = arith.constant 10 : index
    %c0_32 = arith.constant 0 : index
    %43 = vector.load %arg8[%c10_31, %c0_32] : memref<16x32xf32, #tpu.memory_space<vmem>>, vector<1x32xf32>
    tpu.vector_store %arg8[%c10_31, %c0_32], %42 {strides = array<i32>} : memref<16x32xf32, #tpu.memory_space<vmem>>, vector<1x32xf32>,
    %c11 = arith.constant 11 : index
    %44 = memref.load %arg1[%c11] : memref<16xi32, #tpu.memory_space<smem>>
    %45 = arith.index_cast %44 : i32 to index
    %c0_33 = arith.constant 0 : index
    %46 = vector.load %arg3[%45, %c0_33] : memref<64x32xf32, #tpu.memory_space<vmem>>, vector<1x32xf32>
    %c11_34 = arith.constant 11 : index
    %c0_35 = arith.constant 0 : index
    %47 = vector.load %arg8[%c11_34, %c0_35] : memref<16x32xf32, #tpu.memory_space<vmem>>, vector<1x32xf32>
    tpu.vector_store %arg8[%c11_34, %c0_35], %46 {strides = array<i32>} : memref<16x32xf32, #tpu.memory_space<vmem>>, vector<1x32xf32>,
    %c12 = arith.constant 12 : index
    %48 = memref.load %arg1[%c12] : memref<16xi32, #tpu.memory_space<smem>>
    %49 = arith.index_cast %48 : i32 to index
    %c0_36 = arith.constant 0 : index
    %50 = vector.load %arg3[%49, %c0_36] : memref<64x32xf32, #tpu.memory_space<vmem>>, vector<1x32xf32>
    %c12_37 = arith.constant 12 : index
    %c0_38 = arith.constant 0 : index
    %51 = vector.load %arg8[%c12_37, %c0_38] : memref<16x32xf32, #tpu.memory_space<vmem>>, vector<1x32xf32>
    tpu.vector_store %arg8[%c12_37, %c0_38], %50 {strides = array<i32>} : memref<16x32xf32, #tpu.memory_space<vmem>>, vector<1x32xf32>,
    %c13 = arith.constant 13 : index
    %52 = memref.load %arg1[%c13] : memref<16xi32, #tpu.memory_space<smem>>
    %53 = arith.index_cast %52 : i32 to index
    %c0_39 = arith.constant 0 : index
    %54 = vector.load %arg3[%53, %c0_39] : memref<64x32xf32, #tpu.memory_space<vmem>>, vector<1x32xf32>
    %c13_40 = arith.constant 13 : index
    %c0_41 = arith.constant 0 : index
    %55 = vector.load %arg8[%c13_40, %c0_41] : memref<16x32xf32, #tpu.memory_space<vmem>>, vector<1x32xf32>
    tpu.vector_store %arg8[%c13_40, %c0_41], %54 {strides = array<i32>} : memref<16x32xf32, #tpu.memory_space<vmem>>, vector<1x32xf32>,
    %c14 = arith.constant 14 : index
    %56 = memref.load %arg1[%c14] : memref<16xi32, #tpu.memory_space<smem>>
    %57 = arith.index_cast %56 : i32 to index
    %c0_42 = arith.constant 0 : index
    %58 = vector.load %arg3[%57, %c0_42] : memref<64x32xf32, #tpu.memory_space<vmem>>, vector<1x32xf32>
    %c14_43 = arith.constant 14 : index
    %c0_44 = arith.constant 0 : index
    %59 = vector.load %arg8[%c14_43, %c0_44] : memref<16x32xf32, #tpu.memory_space<vmem>>, vector<1x32xf32>
    tpu.vector_store %arg8[%c14_43, %c0_44], %58 {strides = array<i32>} : memref<16x32xf32, #tpu.memory_space<vmem>>, vector<1x32xf32>,
    %c15 = arith.constant 15 : index
    %60 = memref.load %arg1[%c15] : memref<16xi32, #tpu.memory_space<smem>>
    %61 = arith.index_cast %60 : i32 to index
    %c0_45 = arith.constant 0 : index
    %62 = vector.load %arg3[%61, %c0_45] : memref<64x32xf32, #tpu.memory_space<vmem>>, vector<1x32xf32>
    %c15_46 = arith.constant 15 : index
    %c0_47 = arith.constant 0 : index
    %63 = vector.load %arg8[%c15_46, %c0_47] : memref<16x32xf32, #tpu.memory_space<vmem>>, vector<1x32xf32>
    tpu.vector_store %arg8[%c15_46, %c0_47], %62 {strides = array<i32>} : memref<16x32xf32, #tpu.memory_space<vmem>>, vector<1x32xf32>,
    %c0_48 = arith.constant 0 : index
    %c0_49 = arith.constant 0 : index
    %64 = vector.load %arg2[%c0_48, %c0_49] : memref<8x32xf32, #tpu.memory_space<vmem>>, vector<8x32xf32>
    %65 = tpu.concatenate %64, %64 in 0 : vector<8x32xf32>, vector<8x32xf32> -> vector<16x32xf32>
    %c0_50 = arith.constant 0 : index
    %c0_51 = arith.constant 0 : index
    %66 = vector.load %arg8[%c0_50, %c0_51] : memref<16x32xf32, #tpu.memory_space<vmem>>, vector<16x32xf32>
    %67 = arith.addf %66, %65 : vector<16x32xf32>
    %c0_52 = arith.constant 0 : index
    %c0_53 = arith.constant 0 : index
    %68 = vector.load %arg4[%c0_52, %c0_53] : memref<32x96xf32, #tpu.memory_space<vmem>>, vector<32x96xf32>
    %cst = arith.constant dense<0.000000e+00> : vector<16x96xf32>
    %69 = tpu.matmul %67, %68, %cst {dimension_numbers = #tpu.dot_dimension_numbers<[1], [0], [0], [1], [0, 0, 1, 1], [], []>} : vector<16x32xf32>, vector<32x96xf32>, vector<16x96xf32> -> vector<16x96xf32>
    %70 = vector.extract_strided_slice %69 {offsets = [0, 0], sizes = [16, 32], strides = [1, 1]} : vector<16x96xf32> to vector<16x32xf32>
    %71 = vector.extract_strided_slice %69 {offsets = [0, 32], sizes = [16, 32], strides = [1, 1]} : vector<16x96xf32> to vector<16x32xf32>
    %72 = vector.extract_strided_slice %69 {offsets = [0, 64], sizes = [16, 32], strides = [1, 1]} : vector<16x96xf32> to vector<16x32xf32>
    %73 = tpu.iota {dimensions = array<i32: 0>} : vector<8x8xi32>
    %74 = tpu.iota {dimensions = array<i32: 1>} : vector<8x8xi32>
    %75 = arith.cmpi sle, %74, %73 : vector<8x8xi32>
    %76 = vector.extract_strided_slice %70 {offsets = [0, 0], sizes = [8, 32], strides = [1, 1]} : vector<16x32xf32> to vector<8x32xf32>
    %77 = vector.extract_strided_slice %71 {offsets = [0, 0], sizes = [8, 32], strides = [1, 1]} : vector<16x32xf32> to vector<8x32xf32>
    %78 = vector.extract_strided_slice %72 {offsets = [0, 0], sizes = [8, 32], strides = [1, 1]} : vector<16x32xf32> to vector<8x32xf32>
    %cst_54 = arith.constant dense<0.000000e+00> : vector<8x8xf32>
    %79 = tpu.matmul %76, %77, %cst_54 {dimension_numbers = #tpu.dot_dimension_numbers<[1], [1], [0], [0], [0, 0, 1, 0], [], []>} : vector<8x32xf32>, vector<8x32xf32>, vector<8x8xf32> -> vector<8x8xf32>
    %cst_55 = arith.constant 0.176776692 : f32
    %80 = vector.broadcast %cst_55 : f32 to vector<8x8xf32>
    %81 = arith.mulf %79, %80 : vector<8x8xf32>
    %cst_56 = arith.constant 0xFF800000 : f32
    %82 = vector.broadcast %cst_56 : f32 to vector<8x8xf32>
    %83 = arith.select %75, %81, %82 : vector<8x8xi1>, vector<8x8xf32>
    %cst_57 = arith.constant dense<0xFF800000> : vector<8xf32>
    %84 = vector.multi_reduction <maximumf>, %83, %cst_57 [0] : vector<8x8xf32> to vector<8xf32>
    %85 = vector.shape_cast %84 : vector<8xf32> to vector<1x8xf32>
    %86 = vector.broadcast %85 : vector<1x8xf32> to vector<8x8xf32>
    %87 = arith.subf %83, %86 : vector<8x8xf32>
    %88 = math.exp %87 : vector<8x8xf32>
    %cst_58 = arith.constant dense<0.000000e+00> : vector<8xf32>
    %89 = vector.multi_reduction <add>, %88, %cst_58 [0] : vector<8x8xf32> to vector<8xf32>
    %90 = vector.shape_cast %89 : vector<8xf32> to vector<1x8xf32>
    %91 = vector.broadcast %90 : vector<1x8xf32> to vector<8x8xf32>
    %92 = arith.divf %88, %91 : vector<8x8xf32>
    %cst_59 = arith.constant dense<0.000000e+00> : vector<8x32xf32>
    %93 = tpu.matmul %92, %78, %cst_59 {dimension_numbers = #tpu.dot_dimension_numbers<[1], [0], [0], [1], [0, 0, 1, 1], [], []>} : vector<8x8xf32>, vector<8x32xf32>, vector<8x32xf32> -> vector<8x32xf32>
    %94 = vector.extract_strided_slice %70 {offsets = [8, 0], sizes = [8, 32], strides = [1, 1]} : vector<16x32xf32> to vector<8x32xf32>
    %95 = vector.extract_strided_slice %71 {offsets = [8, 0], sizes = [8, 32], strides = [1, 1]} : vector<16x32xf32> to vector<8x32xf32>
    %96 = vector.extract_strided_slice %72 {offsets = [8, 0], sizes = [8, 32], strides = [1, 1]} : vector<16x32xf32> to vector<8x32xf32>
    %cst_60 = arith.constant dense<0.000000e+00> : vector<8x8xf32>
    %97 = tpu.matmul %94, %95, %cst_60 {dimension_numbers = #tpu.dot_dimension_numbers<[1], [1], [0], [0], [0, 0, 1, 0], [], []>} : vector<8x32xf32>, vector<8x32xf32>, vector<8x8xf32> -> vector<8x8xf32>
    %cst_61 = arith.constant 0.176776692 : f32
    %98 = vector.broadcast %cst_61 : f32 to vector<8x8xf32>
    %99 = arith.mulf %97, %98 : vector<8x8xf32>
    %cst_62 = arith.constant 0xFF800000 : f32
    %100 = vector.broadcast %cst_62 : f32 to vector<8x8xf32>
    %101 = arith.select %75, %99, %100 : vector<8x8xi1>, vector<8x8xf32>
    %cst_63 = arith.constant dense<0xFF800000> : vector<8xf32>
    %102 = vector.multi_reduction <maximumf>, %101, %cst_63 [0] : vector<8x8xf32> to vector<8xf32>
    %103 = vector.shape_cast %102 : vector<8xf32> to vector<1x8xf32>
    %104 = vector.broadcast %103 : vector<1x8xf32> to vector<8x8xf32>
    %105 = arith.subf %101, %104 : vector<8x8xf32>
    %106 = math.exp %105 : vector<8x8xf32>
    %cst_64 = arith.constant dense<0.000000e+00> : vector<8xf32>
    %107 = vector.multi_reduction <add>, %106, %cst_64 [0] : vector<8x8xf32> to vector<8xf32>
    %108 = vector.shape_cast %107 : vector<8xf32> to vector<1x8xf32>
    %109 = vector.broadcast %108 : vector<1x8xf32> to vector<8x8xf32>
    %110 = arith.divf %106, %109 : vector<8x8xf32>
    %cst_65 = arith.constant dense<0.000000e+00> : vector<8x32xf32>
    %111 = tpu.matmul %110, %96, %cst_65 {dimension_numbers = #tpu.dot_dimension_numbers<[1], [0], [0], [1], [0, 0, 1, 1], [], []>} : vector<8x8xf32>, vector<8x32xf32>, vector<8x32xf32> -> vector<8x32xf32>
    %112 = tpu.concatenate %93, %111 in 0 : vector<8x32xf32>, vector<8x32xf32> -> vector<16x32xf32>
    %c0_66 = arith.constant 0 : index
    %c0_67 = arith.constant 0 : index
    %113 = vector.load %arg5[%c0_66, %c0_67] : memref<32x128xf32, #tpu.memory_space<vmem>>, vector<32x128xf32>
    %cst_68 = arith.constant dense<0.000000e+00> : vector<16x128xf32>
    %114 = tpu.matmul %112, %113, %cst_68 {dimension_numbers = #tpu.dot_dimension_numbers<[1], [0], [0], [1], [0, 0, 1, 1], [], []>} : vector<16x32xf32>, vector<32x128xf32>, vector<16x128xf32> -> vector<16x128xf32>
    %c0_69 = arith.constant 0 : index
    %c0_70 = arith.constant 0 : index
    %115 = vector.load %arg6[%c0_69, %c0_70] : memref<1x128xf32, #tpu.memory_space<vmem>>, vector<1x128xf32>
    %116 = vector.broadcast %115 : vector<1x128xf32> to vector<16x128xf32>
    %117 = arith.addf %114, %116 : vector<16x128xf32>
    %c0_71 = arith.constant 0 : index
    %c0_72 = arith.constant 0 : index
    %118 = vector.load %arg7[%c0_71, %c0_72] : memref<16x128xf32, #tpu.memory_space<vmem>>, vector<16x128xf32>
    tpu.vector_store %arg7[%c0_71, %c0_72], %117 {strides = array<i32>} : memref<16x128xf32, #tpu.memory_space<vmem>>, vector<16x128xf32>,
    return
  }
  func.func @transform_0(%arg0: i32, %arg1: memref<16xi32, #tpu.memory_space<smem>>) -> (i32, i32) {
    %c0_i32 = arith.constant 0 : i32
    %c0_i32_0 = arith.constant 0 : i32
    %c0_i32_1 = arith.constant 0 : i32
    return %c0_i32, %c0_i32_0 : i32, i32
  }
  func.func @transform_1(%arg0: i32, %arg1: memref<16xi32, #tpu.memory_space<smem>>) -> (i32, i32) {
    %c0_i32 = arith.constant 0 : i32
    %c0_i32_0 = arith.constant 0 : i32
    %c0_i32_1 = arith.constant 0 : i32
    return %c0_i32, %c0_i32_0 : i32, i32
  }
  func.func @transform_2(%arg0: i32, %arg1: memref<16xi32, #tpu.memory_space<smem>>) -> (i32, i32) {
    %c0_i32 = arith.constant 0 : i32
    %c0_i32_0 = arith.constant 0 : i32
    %c0_i32_1 = arith.constant 0 : i32
    return %c0_i32, %c0_i32_0 : i32, i32
  }
  func.func @transform_3(%arg0: i32, %arg1: memref<16xi32, #tpu.memory_space<smem>>) -> (i32, i32) {
    %c0_i32 = arith.constant 0 : i32
    %c0_i32_0 = arith.constant 0 : i32
    %c0_i32_1 = arith.constant 0 : i32
    return %c0_i32, %c0_i32_0 : i32, i32
  }
  func.func @transform_4(%arg0: i32, %arg1: memref<16xi32, #tpu.memory_space<smem>>) -> (i32, i32) {
    %c0_i32 = arith.constant 0 : i32
    %c0_i32_0 = arith.constant 0 : i32
    %c0_i32_1 = arith.constant 0 : i32
    return %c0_i32, %c0_i32_0 : i32, i32
  }
  func.func @transform_5(%arg0: i32, %arg1: memref<16xi32, #tpu.memory_space<smem>>) -> (i32, i32) {
    %c0_i32 = arith.constant 0 : i32
    %c0_i32_0 = arith.constant 0 : i32
    %c0_i32_1 = arith.constant 0 : i32
    return %c0_i32, %c0_i32_0 : i32, i32
  }
}

</mosaic_0001>

<llo_original>
// kernel: tpu_custom_call.1
$region0: #{tpu_custom_call.1}
  #allocation0 [shape = 'u32[]', space=smem, size = 0x4, offset = 0x4, fixed_abs, tag = 'smem constant byte address 0x4 - core index']
  #allocation1 [shape = 'u32[72,128]{1,0:T(1,128)}', space=vmem, size = 0x9000, scoped, tag = 'internal scratch']
  #allocation2 [shape = 'f32[16,32]{1,0:T(8,128)}', space=vmem, size = 0x2000, scoped, tag = 'scratch operand']
  #allocation3 [shape = 's32[1]{0}', space=sflag, size = 0x4, scoped, tag = 'scoped memory for tpu_custom_call.1']
  #allocation4 [shape = 'u8[512]{0}', space=smem, size = 0x200, scoped, tag = 'prefetched SMEM operand 0']
  %s0 = inlined_call_operand.vmem [shape: s32[16], index: 0, kind: input, shape index: {}]
  %s1 = inlined_call_operand.vmem [shape: f32[8,32], index: 1, kind: input, shape index: {}]
  %s2 = inlined_call_operand.vmem [shape: f32[64,32], index: 2, kind: input, shape index: {}]
  %s3 = inlined_call_operand.vmem [shape: f32[32,96], index: 3, kind: input, shape index: {}]
  %s4 = inlined_call_operand.vmem [shape: f32[32,128], index: 4, kind: input, shape index: {}]
  %s5 = inlined_call_operand.vmem [shape: f32[1,128], index: 5, kind: input, shape index: {}]
  %s6 = inlined_call_operand.hbm [shape: f32[16,128], index: 6, kind: output, shape index: {}]
  %s7 = sld [smem:[#allocation0]]
  $region30: #{tpu_custom_call.1} parent=0
    _
  %s9 = ssub.s32 1, %s7
  %s10 = scalar_select 0, %s9, %s7
  %s12 = sshll.u32 %s0, 4
  %s13 = int_to_ptr.vmem [resolvable:$true] %s12
  %15 = dma.vmem_to_smem %s13, 16, [#allocation4], [#allocation3]
  %17 = dma.done [#allocation3], 16
  %18 = sfence
  $region1: #{tpu_custom_call.1} parent=0
    #allocation5 [shape = 'u8[8192]{0}', space=vmem, size = 0x2000, scoped, tag = 'output window, operand 0, single buffered']
    #allocation6 [shape = 's32[1]{0}', space=sflag, size = 0x4, scoped, tag = 'scoped memory for tpu_custom_call.1']
    %19 = vsyncpa [#allocation6], 0
    // Predicated region
    $region2: #{tpu_custom_call.1} parent=1 // pred_check
      _
    $region3: #{tpu_custom_call.1} parent=1 // pred_check_branch
      %21 = sbr.rel (0) target = $region5
    $region4: #{tpu_custom_call.1} parent=1 // pred_region
      _
    $region5: #{tpu_custom_call.1} parent=1 // pred_fallthru
      _
    // Predicated region
    $region6: #{tpu_custom_call.1} parent=1 // pred_check
      _
    $region7: #{tpu_custom_call.1} parent=1 // pred_check_branch
      %23 = sbr.rel (0) target = $region9
    $region8: #{tpu_custom_call.1} parent=1 // pred_region
      _
    $region9: #{tpu_custom_call.1} parent=1 // pred_fallthru
      _
    // Predicated region
    $region10: #{tpu_custom_call.1} parent=1 // pred_check
      _
    $region11: #{tpu_custom_call.1} parent=1 // pred_check_branch
      %25 = sbr.rel (0) target = $region13
    $region12: #{tpu_custom_call.1} parent=1 // pred_region
      _
    $region13: #{tpu_custom_call.1} parent=1 // pred_fallthru
      _
    // Predicated region
    $region14: #{tpu_custom_call.1} parent=1 // pred_check
      _
    $region15: #{tpu_custom_call.1} parent=1 // pred_check_branch
      %27 = sbr.rel (0) target = $region17
    $region16: #{tpu_custom_call.1} parent=1 // pred_region
      _
    $region17: #{tpu_custom_call.1} parent=1 // pred_fallthru
      _
    // Predicated region
    $region18: #{tpu_custom_call.1} parent=1 // pred_check
      _
    $region19: #{tpu_custom_call.1} parent=1 // pred_check_branch
      %29 = sbr.rel (0) target = $region21
    $region20: #{tpu_custom_call.1} parent=1 // pred_region
      _
    $region21: #{tpu_custom_call.1} parent=1 // pred_fallthru
      _
    %s30 = sld [smem:[#allocation4]]
    %s31 = scalar_lea.vmem %s2, %s30
    %v32 = vld [vmem:[%s31] sm:$0x1]
    %vm33 = vcmask 253952
    %34 = vst.msk [vmem:[#allocation2] sm:$0x1] %vm33, %v32
    %s35 = sld [smem:[#allocation4 + $0x1]]
    %s36 = scalar_lea.vmem %s2, %s35
    %v37 = vld [vmem:[%s36] sm:$0x1]
    %38 = vst.msk [vmem:[#allocation2 + $0x1] sm:$0x1] %vm33, %v37
    %s39 = sld [smem:[#allocation4 + $0x2]]
    %s40 = scalar_lea.vmem %s2, %s39
    %v41 = vld [vmem:[%s40] sm:$0x1]
    %42 = vst.msk [vmem:[#allocation2 + $0x2] sm:$0x1] %vm33, %v41
    %s43 = sld [smem:[#allocation4 + $0x3]]
    %s44 = scalar_lea.vmem %s2, %s43
    %v45 = vld [vmem:[%s44] sm:$0x1]
    %46 = vst.msk [vmem:[#allocation2 + $0x3] sm:$0x1] %vm33, %v45
    %s47 = sld [smem:[#allocation4 + $0x4]]
    %s48 = scalar_lea.vmem %s2, %s47
    %v49 = vld [vmem:[%s48] sm:$0x1]
    %50 = vst.msk [vmem:[#allocation2 + $0x4] sm:$0x1] %vm33, %v49
    %s51 = sld [smem:[#allocation4 + $0x5]]
    %s52 = scalar_lea.vmem %s2, %s51
    %v53 = vld [vmem:[%s52] sm:$0x1]
    %54 = vst.msk [vmem:[#allocation2 + $0x5] sm:$0x1] %vm33, %v53
    %s55 = sld [smem:[#allocation4 + $0x6]]
    %s56 = scalar_lea.vmem %s2, %s55
    %v57 = vld [vmem:[%s56] sm:$0x1]
    %58 = vst.msk [vmem:[#allocation2 + $0x6] sm:$0x1] %vm33, %v57
    %s59 = sld [smem:[#allocation4 + $0x7]]
    %s60 = scalar_lea.vmem %s2, %s59
    %v61 = vld [vmem:[%s60] sm:$0x1]
    %62 = vst.msk [vmem:[#allocation2 + $0x7] sm:$0x1] %vm33, %v61
    %s63 = sld [smem:[#allocation4 + $0x8]]
    %s64 = scalar_lea.vmem %s2, %s63
    %v65 = vld [vmem:[%s64] sm:$0x1]
    %66 = vst.msk [vmem:[#allocation2 + $0x8] sm:$0x1] %vm33, %v65
    %s67 = sld [smem:[#allocation4 + $0x9]]
    %s68 = scalar_lea.vmem %s2, %s67
    %v69 = vld [vmem:[%s68] sm:$0x1]
    %70 = vst.msk [vmem:[#allocation2 + $0x9] sm:$0x1] %vm33, %v69
    %s71 = sld [smem:[#allocation4 + $0xa]]
    %s72 = scalar_lea.vmem %s2, %s71
    %v73 = vld [vmem:[%s72] sm:$0x1]
    %74 = vst.msk [vmem:[#allocation2 + $0xa] sm:$0x1] %vm33, %v73
    %s75 = sld [smem:[#allocation4 + $0xb]]
    %s76 = scalar_lea.vmem %s2, %s75
    %v77 = vld [vmem:[%s76] sm:$0x1]
    %78 = vst.msk [vmem:[#allocation2 + $0xb] sm:$0x1] %vm33, %v77
    %s79 = sld [smem:[#allocation4 + $0xc]]
    %s80 = scalar_lea.vmem %s2, %s79
    %v81 = vld [vmem:[%s80] sm:$0x1]
    %82 = vst.msk [vmem:[#allocation2 + $0xc] sm:$0x1] %vm33, %v81
    %s83 = sld [smem:[#allocation4 + $0xd]]
    %s84 = scalar_lea.vmem %s2, %s83
    %v85 = vld [vmem:[%s84] sm:$0x1]
    %86 = vst.msk [vmem:[#allocation2 + $0xd] sm:$0x1] %vm33, %v85
    %s87 = sld [smem:[#allocation4 + $0xe]]
    %s88 = scalar_lea.vmem %s2, %s87
    %v89 = vld [vmem:[%s88] sm:$0x1]
    %90 = vst.msk [vmem:[#allocation2 + $0xe] sm:$0x1] %vm33, %v89
    %s91 = sld [smem:[#allocation4 + $0xf]]
    %s92 = scalar_lea.vmem %s2, %s91
    %v93 = vld [vmem:[%s92] sm:$0x1]
    %94 = vst.msk [vmem:[#allocation2 + $0xf] sm:$0x1] %vm33, %v93
    %v95 = vld [vmem:[%s1] sm:$0xff]
    %v96 = vld [vmem:[#allocation2] sm:$0xff]
    %v97 = vld [vmem:[#allocation2 + $0x8] sm:$0xff]
    %v98 = vadd.f32 %v96, %v95
    %v99 = vadd.f32 %v97, %v95
    %v100 = vld [vmem:[%s3] sm:$0xff]
    %v101 = vld [vmem:[%s3 + $0x8] sm:$0xff]
    %v102 = vld [vmem:[%s3 + $0x10] sm:$0xff]
    %v103 = vld [vmem:[%s3 + $0x18] sm:$0xff]
    %vm104 = vcmask 261120
    %v106 = vsel %vm104, %v98, 0
    %v109 = vsel %vm104, %v99, 0
    %111 = vmatpush.msra.mxu0 0.0
    %112 = vmatpush.msra.mxu0 0.0
    %113 = vmatpush.msra.mxu0 0.0
    %114 = vmatpush.msra.mxu0 0.0
    %115 = vmatpush.msra.mxu0 0.0
    %116 = vmatpush.msra.mxu0 0.0
    %117 = vmatpush.msra.mxu0 0.0
    %118 = vmatpush.msra.mxu0 0.0
    %119 = vmatpush.msra.mxu0 0.0
    %120 = vmatpush.msra.mxu0 0.0
    %121 = vmatpush.msra.mxu0 0.0
    %122 = vmatpush.msra.mxu0 0.0
    %123 = vmatpush.msra.mxu0 %v103
    %124 = vmatpush.msra.mxu0 %v102
    %125 = vmatpush.msra.mxu0 %v101
    %126 = vmatpush.msra.mxu0 %v100
    %127 = vmatmul.f32.gmra.mxu0 %v106
    %v128 = vpop.f32.mrf.mxu0
    %v129 = vadd.f32 0.0, %v128
    %130 = vmatmul.f32.gmra.mxu0 %v109
    %v131 = vpop.f32.mrf.mxu0
    %v132 = vadd.f32 0.0, %v131
    %133 = vdwg.mxu0
    %v134 = vlaneseq
    %v135 = vshrl.u32 %v134, 7
    %v136 = vlaneseq
    %v137 = vand.u32 %v136, 127
    %vm138 = vcmp.le.s32.totalorder %v137, %v135
    %140 = vrot.lane.b32.xlu0 %v129, 96
    %v141 = vpop.permute.xlu0 %140
    %v142 = vsel %vm104, %v129, 0
    %v144 = vsel %vm104, %v141, 0
    %146 = vmatpush.xpose.msra.mxu0 0.0
    %147 = vmatpush.xpose.msra.mxu0 0.0
    %148 = vmatpush.xpose.msra.mxu0 0.0
    %149 = vmatpush.xpose.msra.mxu0 0.0
    %150 = vmatpush.xpose.msra.mxu0 0.0
    %151 = vmatpush.xpose.msra.mxu0 0.0
    %152 = vmatpush.xpose.msra.mxu0 0.0
    %153 = vmatpush.xpose.msra.mxu0 0.0
    %154 = vmatpush.xpose.msra.mxu0 0.0
    %155 = vmatpush.xpose.msra.mxu0 0.0
    %156 = vmatpush.xpose.msra.mxu0 0.0
    %157 = vmatpush.xpose.msra.mxu0 0.0
    %158 = vmatpush.xpose.msra.mxu0 0.0
    %159 = vmatpush.xpose.msra.mxu0 0.0
    %160 = vmatpush.xpose.msra.mxu0 0.0
    %161 = vmatpush.xpose.msra.mxu0 %v144
    %162 = vmatmul.f32.gmra.mxu0 %v142
    %v163 = vpop.f32.mrf.mxu0
    %v164 = vadd.f32 0.0, %v163
    %165 = vdwg.mxu0
    %v166 = vmul.f32 %v164, 0.17677669
    %v167 = vsel %vm138, %v166, -inf
    %vm168 = vcmask 64512
    %v169 = vsel %vm168, %v167, -inf
    %v170 = vrot.slane %v169, 4
    %v171 = vmax.f32 %v169, %v170
    %v172 = vrot.slane %v171, 2
    %v173 = vmax.f32 %v171, %v172
    %v174 = vrot.slane %v173, 1
    %v175 = vmax.f32 %v173, %v174
    %v176 = vsub.f32 %v167, %v175
    %v177 = vmul.f32 %v176, 1.442695
    %v178 = vpow.pop %v177
    %v179 = vsel %vm168, %v178, 0.0
    %v180 = vrot.slane %v179, 4
    %v181 = vadd.f32 %v179, %v180
    %v182 = vrot.slane %v181, 2
    %v183 = vadd.f32 %v181, %v182
    %v184 = vrot.slane %v183, 1
    %v185 = vadd.f32 %v183, %v184
    %v186 = vrcp.pop %v185
    %v187 = vmul.f32 %v185, %v186
    %v188 = vsub.f32 1.0, %v187
    %v189 = vmul.f32 %v186, %v188
    %v190 = vadd.f32 %v186, %v189
    %vm191 = vweird.f32 %v185
    %vm192 = vweird.f32 %v186
    %vm193 = vmor %vm191, %vm192
    %v194 = vsel %vm193, %v186, %v190
    %v195 = vand.u32 2147483647, %v185
    %vm196 = vcmp.eq.f32.partialorder %v195, 8.507059e+37
    %v197 = vand.u32 %v185, 2147483648
    %v198 = vor.u32 1.1754944e-38, %v197
    %v199 = vsel %vm196, %v198, %v194
    %v200 = vmul.f32 %v178, %v199
    %201 = vrot.lane.b32.xlu0 %v129, 64
    %v202 = vpop.permute.xlu0 %201
    %v205 = vsel %vm168, %v200, 0
    %207 = vmatpush.msra.mxu0 0.0
    %208 = vmatpush.msra.mxu0 0.0
    %209 = vmatpush.msra.mxu0 0.0
    %210 = vmatpush.msra.mxu0 0.0
    %211 = vmatpush.msra.mxu0 0.0
    %212 = vmatpush.msra.mxu0 0.0
    %213 = vmatpush.msra.mxu0 0.0
    %214 = vmatpush.msra.mxu0 0.0
    %215 = vmatpush.msra.mxu0 0.0
    %216 = vmatpush.msra.mxu0 0.0
    %217 = vmatpush.msra.mxu0 0.0
    %218 = vmatpush.msra.mxu0 0.0
    %219 = vmatpush.msra.mxu0 0.0
    %220 = vmatpush.msra.mxu0 0.0
    %221 = vmatpush.msra.mxu0 0.0
    %222 = vmatpush.msra.mxu0 %v202
    %223 = vmatmul.f32.gmra.mxu0 %v205
    %v224 = vpop.f32.mrf.mxu0
    %v225 = vadd.f32 0.0, %v224
    %226 = vdwg.mxu0
    %228 = vrot.lane.b32.xlu0 %v132, 96
    %v229 = vpop.permute.xlu0 %228
    %v230 = vsel %vm104, %v132, 0
    %v232 = vsel %vm104, %v229, 0
    %234 = vmatpush.xpose.msra.mxu0 0.0
    %235 = vmatpush.xpose.msra.mxu0 0.0
    %236 = vmatpush.xpose.msra.mxu0 0.0
    %237 = vmatpush.xpose.msra.mxu0 0.0
    %238 = vmatpush.xpose.msra.mxu0 0.0
    %239 = vmatpush.xpose.msra.mxu0 0.0
    %240 = vmatpush.xpose.msra.mxu0 0.0
    %241 = vmatpush.xpose.msra.mxu0 0.0
    %242 = vmatpush.xpose.msra.mxu0 0.0
    %243 = vmatpush.xpose.msra.mxu0 0.0
    %244 = vmatpush.xpose.msra.mxu0 0.0
    %245 = vmatpush.xpose.msra.mxu0 0.0
    %246 = vmatpush.xpose.msra.mxu0 0.0
    %247 = vmatpush.xpose.msra.mxu0 0.0
    %248 = vmatpush.xpose.msra.mxu0 0.0
    %249 = vmatpush.xpose.msra.mxu0 %v232
    %250 = vmatmul.f32.gmra.mxu0 %v230
    %v251 = vpop.f32.mrf.mxu0
    %v252 = vadd.f32 0.0, %v251
    %253 = vdwg.mxu0
    %v254 = vmul.f32 %v252, 0.17677669
    %v255 = vsel %vm138, %v254, -inf
    %v256 = vsel %vm168, %v255, -inf
    %v257 = vrot.slane %v256, 4
    %v258 = vmax.f32 %v256, %v257
    %v259 = vrot.slane %v258, 2
    %v260 = vmax.f32 %v258, %v259
    %v261 = vrot.slane %v260, 1
    %v262 = vmax.f32 %v260, %v261
    %v263 = vsub.f32 %v255, %v262
    %v264 = vmul.f32 %v263, 1.442695
    %v265 = vpow.pop %v264
    %v266 = vsel %vm168, %v265, 0.0
    %v267 = vrot.slane %v266, 4
    %v268 = vadd.f32 %v266, %v267
    %v269 = vrot.slane %v268, 2
    %v270 = vadd.f32 %v268, %v269
    %v271 = vrot.slane %v270, 1
    %v272 = vadd.f32 %v270, %v271
    %v273 = vrcp.pop %v272
    %v274 = vmul.f32 %v272, %v273
    %v275 = vsub.f32 1.0, %v274
    %v276 = vmul.f32 %v273, %v275
    %v277 = vadd.f32 %v273, %v276
    %vm278 = vweird.f32 %v272
    %vm279 = vweird.f32 %v273
    %vm280 = vmor %vm278, %vm279
    %v281 = vsel %vm280, %v273, %v277
    %v282 = vand.u32 2147483647, %v272
    %vm283 = vcmp.eq.f32.partialorder %v282, 8.507059e+37
    %v284 = vand.u32 %v272, 2147483648
    %v285 = vor.u32 1.1754944e-38, %v284
    %v286 = vsel %vm283, %v285, %v281
    %v287 = vmul.f32 %v265, %v286
    %288 = vrot.lane.b32.xlu0 %v132, 64
    %v289 = vpop.permute.xlu0 %288
    %v292 = vsel %vm168, %v287, 0
    %294 = vmatpush.msra.mxu0 0.0
    %295 = vmatpush.msra.mxu0 0.0
    %296 = vmatpush.msra.mxu0 0.0
    %297 = vmatpush.msra.mxu0 0.0
    %298 = vmatpush.msra.mxu0 0.0
    %299 = vmatpush.msra.mxu0 0.0
    %300 = vmatpush.msra.mxu0 0.0
    %301 = vmatpush.msra.mxu0 0.0
    %302 = vmatpush.msra.mxu0 0.0
    %303 = vmatpush.msra.mxu0 0.0
    %304 = vmatpush.msra.mxu0 0.0
    %305 = vmatpush.msra.mxu0 0.0
    %306 = vmatpush.msra.mxu0 0.0
    %307 = vmatpush.msra.mxu0 0.0
    %308 = vmatpush.msra.mxu0 0.0
    %309 = vmatpush.msra.mxu0 %v289
    %310 = vmatmul.f32.gmra.mxu0 %v292
    %v311 = vpop.f32.mrf.mxu0
    %v312 = vadd.f32 0.0, %v311
    %313 = vdwg.mxu0
    %v314 = vld [vmem:[%s4] sm:$0xff]
    %v315 = vld [vmem:[%s4 + $0x8] sm:$0xff]
    %v316 = vld [vmem:[%s4 + $0x10] sm:$0xff]
    %v317 = vld [vmem:[%s4 + $0x18] sm:$0xff]
    %v318 = vld [vmem:[%s5] sm:$0x1]
    %v320 = vperm.slane %v318, 0
    %v323 = vsel %vm104, %v225, 0
    %v326 = vsel %vm104, %v312, 0
    %328 = vmatpush.msra.mxu0 0.0
    %329 = vmatpush.msra.mxu0 0.0
    %330 = vmatpush.msra.mxu0 0.0
    %331 = vmatpush.msra.mxu0 0.0
    %332 = vmatpush.msra.mxu0 0.0
    %333 = vmatpush.msra.mxu0 0.0
    %334 = vmatpush.msra.mxu0 0.0
    %335 = vmatpush.msra.mxu0 0.0
    %336 = vmatpush.msra.mxu0 0.0
    %337 = vmatpush.msra.mxu0 0.0
    %338 = vmatpush.msra.mxu0 0.0
    %339 = vmatpush.msra.mxu0 0.0
    %340 = vmatpush.msra.mxu0 %v317
    %341 = vmatpush.msra.mxu0 %v316
    %342 = vmatpush.msra.mxu0 %v315
    %343 = vmatpush.msra.mxu0 %v314
    %344 = vmatmul.f32.gmra.mxu0 %v323
    %v345 = vpop.f32.mrf.mxu0
    %v346 = vadd.f32 %v320, %v345
    %347 = vmatmul.f32.gmra.mxu0 %v326
    %v348 = vpop.f32.mrf.mxu0
    %v349 = vadd.f32 %v320, %v348
    %350 = vdwg.mxu0
    %351 = vst [vmem:[#allocation5] sm:$0xff] %v346
    %352 = vst [vmem:[#allocation5 + $0x8] sm:$0xff] %v349
    // Predicated region
    $region22: #{tpu_custom_call.1} parent=1 // pred_check
      _
    $region23: #{tpu_custom_call.1} parent=1 // pred_check_branch
      %354 = sbr.rel (0) target = $region25
    $region24: #{tpu_custom_call.1} parent=1 // pred_region
      %356 = vsyncadd [#allocation6], 0
      %s357 = sshll.u32 [#allocation5], 4
      %s358 = int_to_ptr.vmem [resolvable:$true] %s357
      %s359 = sshll.u32 %s6, 4
      %s360 = int_to_ptr.hbm [resolvable:$true] %s359
      %365 = dma.vmem_to_hbm [thread:$0]  %s358, 256, %s360, [#allocation6], 128, 128, 8
    $region25: #{tpu_custom_call.1} parent=1 // pred_fallthru
      _
    // Predicated region
    $region26: #{tpu_custom_call.1} parent=1 // pred_check
      _
    $region27: #{tpu_custom_call.1} parent=1 // pred_check_branch
      %367 = sbr.rel (0) target = $region29
    $region28: #{tpu_custom_call.1} parent=1 // pred_region
      %369 = dma.done [#allocation6], 256
    $region29: #{tpu_custom_call.1} parent=1 // pred_fallthru
      _
    %370 = vsyncpa [#allocation6], 1

</llo_original>
